<compile_context>
chip_gen: v6e
topology: v6e:2x2x1
jax: 0.10.0
libtpu: 0.0.40
codegen_flags: <defaults>
</compile_context>

<pallas_src>
import functools

import numpy as np
import jax
import jax.numpy as jnp
from jax import lax
from jax.experimental import pallas as pl
from jax.experimental.pallas import tpu as pltpu

WEIGHT = 2.0          # self.weight
BORDER = (2, 1)       # self.border (set outside __init__ in the original code)


def _cdiv(a, b):
    return -(-a // b)


@functools.lru_cache(maxsize=None)
def _tpu_config():
    """Generation-aware targets: block bytes, vmem limit, #TCs, buffering."""
    kind = ""
    try:
        kind = jax.devices()[0].device_kind.lower()
    except Exception:
        pass
    if "v7" in kind or "7x" in kind:
        # v7x: 64 MiB VMEM per TC, 2 TensorCores, highest HBM BW per TC.
        return dict(block_bytes=4 << 20, vmem_limit=48 << 20, cores=2,
                    deep_buffering=True)
    # v5e / v6e (and other 128 MiB-VMEM single-TC parts).
    return dict(block_bytes=8 << 20, vmem_limit=96 << 20, cores=1,
                deep_buffering=False)


@functools.lru_cache(maxsize=None)
def _border_mask(h, w, bh, bw, p_pad):
    """{0,1} f32 border mask of one (H, W) image, flattened and zero-padded
    to p_pad.  Built once per config on the host (numpy) and cached as a
    device array, so it never costs a per-call HBM pass."""
    m = np.zeros((h, w), dtype=np.float32)
    m[bh:h - bh, bw:w - bw] = 1.0
    out = np.zeros((1, p_pad), dtype=np.float32)
    out[0, :h * w] = m.reshape(-1)
    return jnp.asarray(out)


def _weighted_diff_kernel(yp_ref, yt_ref, mask_ref, out_ref, *,
                          weight, tile_n, steps_n, n_images, need_row_mask):
    c = pl.program_id(0)          # chunk (megacore "parallel" axis)
    p = pl.program_id(1)          # tile along the within-image (P) axis
    n = pl.program_id(2)          # tile along the image (N) axis (innermost)

    @pl.when((p == 0) & (n == 0))
    def _init():
        out_ref[...] = jnp.zeros_like(out_ref)

    d = yp_ref[...].astype(jnp.float32) - yt_ref[...].astype(jnp.float32)

    # Border crop (+ zeroing of the partial last P tile) via the small
    # VMEM-resident mask row.  jnp.where (not multiply) so stale garbage in
    # partially-filled boundary blocks can never poison the sum.
    ok = jnp.broadcast_to(mask_ref[...], d.shape) != 0.0
    if need_row_mask:
        # Last image tile may overhang N; clamped duplicate slots of the
        # chunk split have n_valid <= 0 and are masked away entirely.
        g = c * steps_n + n
        n_valid = n_images - g * tile_n
        rows = lax.broadcasted_iota(jnp.int32, d.shape, 0)
        ok = ok & (rows < n_valid)
    d = jnp.where(ok, d, 0.0)

    term = (1.0 + weight * jnp.abs(d)) * d * d
    # Per-step block reduction (keeps f32 accumulation error small), then one
    # add into the per-chunk (1, 1, tile_p) accumulator that lives in the
    # VMEM-resident output block (written back to HBM once per chunk).
    out_ref[...] += jnp.sum(term, axis=0, keepdims=True)[None]


def loss_weighted_diff(ypred, ytrue, border=BORDER, weight=WEIGHT, *,
                       block_bytes=None, n_chunks=None):
    """Forward of LossWeightedDiff. ypred/ytrue: (B, C, H, W), any float dtype."""
    assert ypred.shape == ytrue.shape and ypred.ndim == 4
    B, C, H, W = ypred.shape
    bh, bw = border
    N = B * C
    P = H * W
    n_valid_elems = N * (H - 2 * bh) * (W - 2 * bw)

    cfg = _tpu_config()
    if block_bytes is None:
        block_bytes = cfg["block_bytes"]
    itemsize = jnp.dtype(ypred.dtype).itemsize
    block_elems = max(block_bytes // itemsize, 1024)

    # ---- Tile selection over the free (N, P) view -------------------------
    if P >= block_elems // 8:
        # Big images: keep <= 8 images per block, tile the within-image axis.
        tile_n = N if N <= 8 else 8
        tp = max(128, ((block_elems // tile_n) // 128) * 128)
        tile_p = P if tp >= P else tp
    else:
        # Small images: whole images, tile only over the image axis.
        tile_p = P
        imgs_fit = block_elems // P                       # >= 8 here
        tile_n = N if imgs_fit >= N else (imgs_fit // 8) * 8

    nN = _cdiv(N, tile_n)
    nP = _cdiv(P, tile_p)
    p_pad = nP * tile_p

    if n_chunks is None:
        n_chunks = cfg["cores"]                           # 2 only on v7x
    n_chunks = n_chunks if (n_chunks >= 2 and nN >= 2) else 1
    steps_n = _cdiv(nN, n_chunks)
    has_dup = n_chunks * steps_n > nN
    need_row_mask = has_dup or (nN * tile_n != N)

    # ---- Inputs: copy-less views; mask cached per config ------------------
    yp2 = ypred.reshape(N, P)
    yt2 = ytrue.reshape(N, P)
    mask = _border_mask(H, W, bh, bw, p_pad)

    if has_dup:
        def data_map(c, p, n):
            # Clamp duplicate trailing slots so their DMA stays in bounds
            # (and is skipped, since the block index repeats); their compute
            # is zeroed by the row mask.
            return (jnp.minimum(c * steps_n + n, nN - 1), p)
    else:
        def data_map(c, p, n):
            return (c * steps_n + n, p)

    def data_spec():
        if cfg["deep_buffering"]:
            try:    # triple-buffer the streamed operands on v7x
                return pl.BlockSpec((tile_n, tile_p), data_map,
                                    pipeline_mode=pl.Buffered(3))
            except Exception:
                pass
        return pl.BlockSpec((tile_n, tile_p), data_map)

    kernel = functools.partial(
        _weighted_diff_kernel, weight=float(weight), tile_n=tile_n,
        steps_n=steps_n, n_images=N, need_row_mask=need_row_mask)

    cost = pl.CostEstimate(
        flops=10 * N * P, transcendentals=0,
        bytes_accessed=2 * N * P * itemsize + p_pad * 4 + n_chunks * tile_p * 4)

    partials = pl.pallas_call(
        kernel,
        out_shape=jax.ShapeDtypeStruct((n_chunks, 1, tile_p), jnp.float32),
        grid_spec=pltpu.PrefetchScalarGridSpec(
            num_scalar_prefetch=0,
            grid=(n_chunks, nP, steps_n),
            in_specs=[data_spec(), data_spec(),
                      # Mask index depends only on the P tile -> DMA'd once
                      # per P tile, VMEM-resident across the inner image loop.
                      pl.BlockSpec((1, tile_p), lambda c, p, n: (0, p))],
            out_specs=pl.BlockSpec((1, 1, tile_p), lambda c, p, n: (c, 0, 0))),
        compiler_params=pltpu.CompilerParams(
            dimension_semantics=("parallel", "arbitrary", "arbitrary"),
            vmem_limit_bytes=cfg["vmem_limit"]),
        cost_estimate=cost,
    )(yp2, yt2, mask)

    return jnp.sum(partials) / jnp.float32(n_valid_elems)


def _reference(ypred, ytrue, border=BORDER, weight=WEIGHT):
    bh, bw = border
    if bh != 0:
        ypred = ypred[..., bh:-bh, :]
        ytrue = ytrue[..., bh:-bh, :]
    if bw != 0:
        ypred = ypred[..., bw:-bw]
        ytrue = ytrue[..., bw:-bw]
    d = ypred.astype(jnp.float32) - ytrue.astype(jnp.float32)
    return jnp.mean((1.0 + weight * jnp.abs(d)) * d * d)


if __name__ == "__main__":
    key = jax.random.PRNGKey(0)
    k1, k2, k3, k4, k5, k6 = jax.random.split(key, 6)

    # 1) Small NCHW input, default (generation-tuned) tiling: single block.
    yp = jax.random.uniform(k1, (2, 4, 16, 16), dtype=jnp.float32)
    yt = (jax.random.uniform(k2, (2, 4, 16, 16)) > 0.5).astype(jnp.float32)
    out = jax.block_until_ready(loss_weighted_diff(yp, yt))
    ref = jax.block_until_ready(_reference(yp, yt))
    assert jnp.allclose(out, ref, rtol=1e-5, atol=1e-6), (out, ref)

    # 1b) bf16 inputs stream at native width and are cast in-kernel.
    out_h = jax.block_until_ready(
        loss_weighted_diff(yp.astype(jnp.bfloat16), yt.astype(jnp.bfloat16)))
    ref_h = jax.block_until_ready(
        _reference(yp.astype(jnp.bfloat16), yt.astype(jnp.bfloat16)))
    assert jnp.allclose(out_h, ref_h, rtol=1e-5, atol=1e-6), (out_h, ref_h)

    # 2) Odd spatial size: exercises within-image (P) tiling, the resident
    #    mask and the masked partial last P tile (1480 % 128 != 0).
    yp_b = jax.random.uniform(k3, (2, 3, 40, 37), dtype=jnp.float32)
    yt_b = (jax.random.uniform(k4, (2, 3, 40, 37)) > 0.5).astype(jnp.float32)
    out_b = jax.block_until_ready(loss_weighted_diff(yp_b, yt_b,
                                                     block_bytes=4096))
    ref_b = jax.block_until_ready(_reference(yp_b, yt_b))
    assert jnp.allclose(out_b, ref_b, rtol=1e-5, atol=1e-6), (out_b, ref_b)

    # 3) Multi-tile on both axes + forced 2-chunk split: exercises the
    #    partial image tile (row mask), the clamped duplicate slot and the
    #    per-chunk accumulators.
    yp_c = jax.random.uniform(k5, (4, 5, 24, 24), dtype=jnp.float32)
    yt_c = (jax.random.uniform(k6, (4, 5, 24, 24)) > 0.5).astype(jnp.float32)
    out_c = jax.block_until_ready(
        loss_weighted_diff(yp_c, yt_c, block_bytes=16384, n_chunks=2))
    ref_c = jax.block_until_ready(_reference(yp_c, yt_c))
    assert jnp.allclose(out_c, ref_c, rtol=1e-5, atol=1e-6), (out_c, ref_c)

    print("KERNEL_OK")
</pallas_src>

<mosaic_0001>
module attributes {stable_mosaic.version = 11 : i64} {
  func.func @_weighted_diff_kernel(%arg0: i32, %arg1: i32, %arg2: i32, %arg3: memref<8x256xf32, #tpu.memory_space<vmem>>, %arg4: memref<8x256xf32, #tpu.memory_space<vmem>>, %arg5: memref<1x256xf32, #tpu.memory_space<vmem>>, %arg6: memref<1x1x256xf32, #tpu.memory_space<vmem>>) attributes {dimension_semantics = [#tpu.dimension_semantics<parallel>, #tpu.dimension_semantics<arbitrary>, #tpu.dimension_semantics<arbitrary>], iteration_bounds = array<i64: 1, 1, 1>, scalar_prefetch = 0 : i64, scratch_operands = 0 : i64, tpu.core_type = #tpu.core_type<tc>, window_params = [{transform_indices = @transform_0, window_bounds = array<i64: 8, 256>}, {transform_indices = @transform_1, window_bounds = array<i64: 8, 256>}, {transform_indices = @transform_2, window_bounds = array<i64: 1, 256>}, {transform_indices = @transform_3, window_bounds = array<i64: 1, 1, 256>}]} {
    %c0_i32 = arith.constant 0 : i32
    %0 = arith.cmpi eq, %arg1, %c0_i32 : i32
    %c0_i32_0 = arith.constant 0 : i32
    %1 = arith.cmpi eq, %arg2, %c0_i32_0 : i32
    %2 = arith.andi %0, %1 : i1
    %3 = arith.extui %2 : i1 to i32
    %c0_i32_1 = arith.constant 0 : i32
    %4 = arith.cmpi ne, %3, %c0_i32_1 : i32
    scf.if %4 {
      %cst_17 = arith.constant 0.000000e+00 : f32
      %28 = vector.broadcast %cst_17 : f32 to vector<1x1x256xf32>
      %c0_18 = arith.constant 0 : index
      %c0_19 = arith.constant 0 : index
      %c0_20 = arith.constant 0 : index
      %29 = vector.load %arg6[%c0_18, %c0_19, %c0_20] : memref<1x1x256xf32, #tpu.memory_space<vmem>>, vector<1x1x256xf32>
      tpu.vector_store %arg6[%c0_18, %c0_19, %c0_20], %28 {strides = array<i32>} : memref<1x1x256xf32, #tpu.memory_space<vmem>>, vector<1x1x256xf32>,
    } else {
    }
    %c0 = arith.constant 0 : index
    %c0_2 = arith.constant 0 : index
    %5 = vector.load %arg3[%c0, %c0_2] : memref<8x256xf32, #tpu.memory_space<vmem>>, vector<8x256xf32>
    %c0_3 = arith.constant 0 : index
    %c0_4 = arith.constant 0 : index
    %6 = vector.load %arg4[%c0_3, %c0_4] : memref<8x256xf32, #tpu.memory_space<vmem>>, vector<8x256xf32>
    %7 = arith.subf %5, %6 : vector<8x256xf32>
    %c0_5 = arith.constant 0 : index
    %c0_6 = arith.constant 0 : index
    %8 = vector.load %arg5[%c0_5, %c0_6] : memref<1x256xf32, #tpu.memory_space<vmem>>, vector<1x256xf32>
    %9 = vector.shape_cast %8 : vector<1x256xf32> to vector<1x256xf32>
    %10 = vector.broadcast %9 : vector<1x256xf32> to vector<8x256xf32>
    %cst = arith.constant 0.000000e+00 : f32
    %11 = vector.broadcast %cst : f32 to vector<8x256xf32>
    %12 = arith.cmpf one, %10, %11 : vector<8x256xf32>
    %cst_7 = arith.constant 0.000000e+00 : f32
    %13 = vector.broadcast %cst_7 : f32 to vector<8x256xf32>
    %14 = arith.select %12, %7, %13 : vector<8x256xi1>, vector<8x256xf32>
    %15 = math.absf %14 : vector<8x256xf32>
    %cst_8 = arith.constant 2.000000e+00 : f32
    %16 = vector.broadcast %cst_8 : f32 to vector<8x256xf32>
    %17 = arith.mulf %16, %15 : vector<8x256xf32>
    %cst_9 = arith.constant 1.000000e+00 : f32
    %18 = vector.broadcast %cst_9 : f32 to vector<8x256xf32>
    %19 = arith.addf %18, %17 : vector<8x256xf32>
    %20 = arith.mulf %19, %14 : vector<8x256xf32>
    %21 = arith.mulf %20, %14 : vector<8x256xf32>
    %c0_10 = arith.constant 0 : index
    %c0_11 = arith.constant 0 : index
    %c0_12 = arith.constant 0 : index
    %22 = vector.load %arg6[%c0_10, %c0_11, %c0_12] : memref<1x1x256xf32, #tpu.memory_space<vmem>>, vector<1x1x256xf32>
    %cst_13 = arith.constant dense<0.000000e+00> : vector<256xf32>
    %23 = vector.multi_reduction <add>, %21, %cst_13 [0] : vector<8x256xf32> to vector<256xf32>
    %24 = vector.shape_cast %23 : vector<256xf32> to vector<1x256xf32>
    %25 = vector.shape_cast %24 : vector<1x256xf32> to vector<1x1x256xf32>
    %26 = arith.addf %22, %25 : vector<1x1x256xf32>
    %c0_14 = arith.constant 0 : index
    %c0_15 = arith.constant 0 : index
    %c0_16 = arith.constant 0 : index
    %27 = vector.load %arg6[%c0_14, %c0_15, %c0_16] : memref<1x1x256xf32, #tpu.memory_space<vmem>>, vector<1x1x256xf32>
    tpu.vector_store %arg6[%c0_14, %c0_15, %c0_16], %26 {strides = array<i32>} : memref<1x1x256xf32, #tpu.memory_space<vmem>>, vector<1x1x256xf32>,
    return
  }
  func.func @transform_0(%arg0: i32, %arg1: i32, %arg2: i32) -> (i32, i32) {
    %c1_i32 = arith.constant 1 : i32
    %0 = arith.muli %arg0, %c1_i32 : i32
    %1 = arith.addi %0, %arg2 : i32
    %c0_i32 = arith.constant 0 : i32
    return %1, %arg1 : i32, i32
  }
  func.func @transform_1(%arg0: i32, %arg1: i32, %arg2: i32) -> (i32, i32) {
    %c1_i32 = arith.constant 1 : i32
    %0 = arith.muli %arg0, %c1_i32 : i32
    %1 = arith.addi %0, %arg2 : i32
    %c0_i32 = arith.constant 0 : i32
    return %1, %arg1 : i32, i32
  }
  func.func @transform_2(%arg0: i32, %arg1: i32, %arg2: i32) -> (i32, i32) {
    %c0_i32 = arith.constant 0 : i32
    %c0_i32_0 = arith.constant 0 : i32
    return %c0_i32, %arg1 : i32, i32
  }
  func.func @transform_3(%arg0: i32, %arg1: i32, %arg2: i32) -> (i32, i32, i32) {
    %c0_i32 = arith.constant 0 : i32
    %c0_i32_0 = arith.constant 0 : i32
    %c0_i32_1 = arith.constant 0 : i32
    return %arg0, %c0_i32, %c0_i32_0 : i32, i32, i32
  }
}

</mosaic_0001>

<llo_original>
// kernel: tpu_custom_call.1
$region0: #{tpu_custom_call.1}
  #allocation0 [shape = 'u32[]', space=smem, size = 0x4, offset = 0x4, fixed_abs, tag = 'smem constant byte address 0x4 - core index']
  #allocation1 [shape = 'u32[144,128]{1,0:T(1,128)}', space=vmem, size = 0x12000, scoped, tag = 'internal scratch']
  %s0 = inlined_call_operand.hbm [shape: f32[8,256], index: 0, kind: input, shape index: {}]
  %s1 = inlined_call_operand.hbm [shape: f32[8,256], index: 1, kind: input, shape index: {}]
  %s2 = inlined_call_operand.vmem [shape: f32[1,256], index: 2, kind: input, shape index: {}]
  %s3 = inlined_call_operand.hbm [shape: f32[1,1,256], index: 3, kind: output, shape index: {}]
  %s4 = sld [smem:[#allocation0]]
  $region34: #{tpu_custom_call.1} parent=0
    _
  %s6 = ssub.s32 1, %s4
  %s7 = scalar_select 0, %s6, %s4
  $region1: #{tpu_custom_call.1} parent=0
    #allocation2 [shape = 'u8[8192]{0}', space=vmem, size = 0x2000, scoped, tag = 'input window, operand 0, single buffered']
    #allocation3 [shape = 's32[1]{0}', space=sflag, size = 0x4, scoped, tag = 'scoped memory for tpu_custom_call.1']
    #allocation4 [shape = 's32[1]{0}', space=sflag, size = 0x4, scoped, tag = 'scoped memory for tpu_custom_call.1']
    #allocation5 [shape = 'u8[8192]{0}', space=vmem, size = 0x2000, scoped, tag = 'input window, operand 1, single buffered']
    #allocation6 [shape = 's32[1]{0}', space=sflag, size = 0x4, scoped, tag = 'scoped memory for tpu_custom_call.1']
    #allocation7 [shape = 'u8[1024]{0}', space=vmem, size = 0x400, scoped, tag = 'output window, operand 0, single buffered']
    %8 = vsyncpa [#allocation3], 0
    %9 = vsyncpa [#allocation6], 0
    %10 = vsyncpa [#allocation4], 0
    // Predicated region
    $region2: #{tpu_custom_call.1} parent=1 // pred_check
      _
    $region3: #{tpu_custom_call.1} parent=1 // pred_check_branch
      %12 = sbr.rel (0) target = $region5
    $region4: #{tpu_custom_call.1} parent=1 // pred_region
      %s13 = sadd.s32 0, 0
      %s15 = ssub.s32 256, 256
      %16 = vsyncadd [#allocation3], %s15
      %s17 = smul.addr %s13, 2
      %s18 = smul.addr %s17, 128
      %s19 = scalar_lea.hbm %s0, %s18
      %s21 = sshll.u32 [#allocation2], 4
      %s22 = int_to_ptr.vmem [resolvable:$true] %s21
      %24 = dma.hbm_to_vmem [thread:$0]  %s19, 256, %s22, [#allocation3]
    $region5: #{tpu_custom_call.1} parent=1 // pred_fallthru
      _
    // Predicated region
    $region6: #{tpu_custom_call.1} parent=1 // pred_check
      _
    $region7: #{tpu_custom_call.1} parent=1 // pred_check_branch
      %26 = sbr.rel (0) target = $region9
    $region8: #{tpu_custom_call.1} parent=1 // pred_region
      %s27 = sadd.s32 0, 0
      %s29 = ssub.s32 256, 256
      %30 = vsyncadd [#allocation6], %s29
      %s31 = smul.addr %s27, 2
      %s32 = smul.addr %s31, 128
      %s33 = scalar_lea.hbm %s1, %s32
      %s35 = sshll.u32 [#allocation5], 4
      %s36 = int_to_ptr.vmem [resolvable:$true] %s35
      %38 = dma.hbm_to_vmem [thread:$0]  %s33, 256, %s36, [#allocation6]
    $region9: #{tpu_custom_call.1} parent=1 // pred_fallthru
      _
    // Predicated region
    $region10: #{tpu_custom_call.1} parent=1 // pred_check
      _
    $region11: #{tpu_custom_call.1} parent=1 // pred_check_branch
      %40 = sbr.rel (0) target = $region13
    $region12: #{tpu_custom_call.1} parent=1 // pred_region
      _
    $region13: #{tpu_custom_call.1} parent=1 // pred_fallthru
      _
    // Predicated region
    $region14: #{tpu_custom_call.1} parent=1 // pred_check
      _
    $region15: #{tpu_custom_call.1} parent=1 // pred_check_branch
      %42 = sbr.rel (0) target = $region17
    $region16: #{tpu_custom_call.1} parent=1 // pred_region
      %43 = dma.done [#allocation3], 256
    $region17: #{tpu_custom_call.1} parent=1 // pred_fallthru
      _
    // Predicated region
    $region18: #{tpu_custom_call.1} parent=1 // pred_check
      _
    $region19: #{tpu_custom_call.1} parent=1 // pred_check_branch
      %45 = sbr.rel (0) target = $region21
    $region20: #{tpu_custom_call.1} parent=1 // pred_region
      %46 = dma.done [#allocation6], 256
    $region21: #{tpu_custom_call.1} parent=1 // pred_fallthru
      _
    %s47 = sadd.s32 0, 0
    %s48 = sadd.s32 0, 0
    %p49 = scmp.eq.s32.totalorder 0, 0
    %p50 = scmp.eq.s32.totalorder 0, 0
    %p51 = pnand %p49, %p50
    %p52 = pneg %p51
    // Predicated region
    $region22: #{tpu_custom_call.1} parent=1 // pred_check
      _
    $region23: #{tpu_custom_call.1} parent=1 // pred_check_branch
      %54 = sbr.rel (%p51) target = $region25
    $region24: #{tpu_custom_call.1} parent=1 // pred_region
      %v55 = vlaneseq
      %vm56 = vcmp.ge.s32.totalorder %v55, 0
      %vm57 = vcmp.lt.s32.totalorder %v55, 256
      %vm58 = vmand %vm56, %vm57
      %59 = vst.msk [vmem:[#allocation7] sm:$0x3] %vm58, 0.0
    $region25: #{tpu_custom_call.1} parent=1 // pred_fallthru
      _
    %v60 = vld [vmem:[#allocation2] sm:$0xff]
    %v61 = vld [vmem:[#allocation2 + $0x8] sm:$0xff]
    %v62 = vld [vmem:[#allocation5] sm:$0xff]
    %v63 = vld [vmem:[#allocation5 + $0x8] sm:$0xff]
    %v64 = vsub.f32 %v60, %v62
    %v65 = vsub.f32 %v61, %v63
    %v66 = vld [vmem:[%s2] sm:$0x3]
    %v68 = vlaneseq
    %v69 = vshrl.u32 %v68, 7
    %v70 = vsub.s32 0, %v69
    %v71 = vrot.slane %v66, %v70
    %v72 = vlaneseq
    %v73 = vshrl.u32 %v72, 7
    %v74 = vsub.s32 1, %v73
    %v75 = vrot.slane %v66, %v74
    %vm78 = vcmp.ne.f32.partialorder %v71, 0.0
    %vm79 = vcmp.ne.f32.partialorder %v75, 0.0
    %v80 = vsel %vm78, %v64, 0.0
    %v81 = vsel %vm79, %v65, 0.0
    %v82 = vand.u32 2147483647, %v80
    %v83 = vand.u32 2147483647, %v81
    %v84 = vmul.f32 %v82, 2.0
    %v85 = vmul.f32 %v83, 2.0
    %v86 = vadd.f32 %v84, 1.0
    %v87 = vadd.f32 %v85, 1.0
    %v88 = vmul.f32 %v86, %v80
    %v89 = vmul.f32 %v87, %v81
    %v90 = vmul.f32 %v88, %v80
    %v91 = vmul.f32 %v89, %v81
    %v92 = vld [vmem:[#allocation7] sm:$0x3]
    %v93 = vrot.slane %v90, 4
    %v94 = vadd.f32 %v90, %v93
    %v95 = vrot.slane %v94, 2
    %v96 = vadd.f32 %v94, %v95
    %v97 = vrot.slane %v96, 1
    %v98 = vadd.f32 %v96, %v97
    %v99 = vrot.slane %v91, 4
    %v100 = vadd.f32 %v91, %v99
    %v101 = vrot.slane %v100, 2
    %v102 = vadd.f32 %v100, %v101
    %v103 = vrot.slane %v102, 1
    %v104 = vadd.f32 %v102, %v103
    %v107 = vcombine.low %v98, %v104
    %v109 = vunpack.c.l.s4 1966171168
    %v110 = vunpack.c.0.s8 %v109
    %v111 = vlaneseq
    %v112 = vshrl.u32 %v111, 7
    %v113 = vsub.s32 %v110, %v112
    %v114 = vrot.slane %v107, %v113
    %v116 = vunpack.c.l.s4 1966171168
    %v117 = vunpack.c.0.s8 %v116
    %v118 = vlaneseq
    %v119 = vshrl.u32 %v118, 7
    %v120 = vsub.s32 %v117, %v119
    %v121 = vrot.slane %v114, %v120
    %v123 = vadd.f32 %v92, %v121
    %v124 = vlaneseq
    %vm125 = vcmp.ge.s32.totalorder %v124, 0
    %vm126 = vcmp.lt.s32.totalorder %v124, 256
    %vm127 = vmand %vm125, %vm126
    %128 = vst.msk [vmem:[#allocation7] sm:$0x3] %vm127, %v123
    // Predicated region
    $region26: #{tpu_custom_call.1} parent=1 // pred_check
      _
    $region27: #{tpu_custom_call.1} parent=1 // pred_check_branch
      %130 = sbr.rel (0) target = $region29
    $region28: #{tpu_custom_call.1} parent=1 // pred_region
      %s132 = ssub.s32 32, 32
      %133 = vsyncadd [#allocation4], %s132
      %s135 = sshll.u32 [#allocation7], 4
      %s136 = int_to_ptr.vmem [resolvable:$true] %s135
      %138 = dma.vmem_to_hbm [thread:$0]  %s136, 32, %s3, [#allocation4]
    $region29: #{tpu_custom_call.1} parent=1 // pred_fallthru
      _
    // Predicated region
    $region30: #{tpu_custom_call.1} parent=1 // pred_check
      _
    $region31: #{tpu_custom_call.1} parent=1 // pred_check_branch
      %140 = sbr.rel (0) target = $region33
    $region32: #{tpu_custom_call.1} parent=1 // pred_region
      %141 = dma.done [#allocation4], 32
    $region33: #{tpu_custom_call.1} parent=1 // pred_fallthru
      _
    %142 = vsyncpa [#allocation3], 1
    %143 = vsyncpa [#allocation6], 1
    %144 = vsyncpa [#allocation4], 1

</llo_original>
